<compile_context>
chip_gen: v7x
topology: tpu7x:2x2x1
jax: 0.10.0
libtpu: 0.0.40
codegen_flags: <defaults>
</compile_context>

<pallas_src>
import functools

import jax
import jax.numpy as jnp
from jax.experimental import pallas as pl
from jax.experimental.pallas import tpu as pltpu


def _mlp_agg_kernel(nv_ref, alpha_ref, w1t_ref, b1_ref, w2t_ref, b2_ref, out_ref,
                    *, num_head: int, in_channels: int, need_softmax: bool):
    H, C = num_head, in_channels
    a = alpha_ref[...]                           # (H, TB, S) f32
    if need_softmax:
        # torch.softmax(alpha, dim=-2) over the num_sample axis (last axis in this layout).
        a = jax.nn.softmax(a, axis=-1)
    nv = nv_ref[...]                             # (TB, S, H*C) f32
    w1t = w1t_ref[...]                           # (C, hid)   -- pre-transposed in wrapper
    b1 = b1_ref[...]                             # (1, hid)
    w2t = w2t_ref[...]                           # (hid, C)
    b2 = b2_ref[...]                             # (1, C)

    ys = []
    for h in range(H):                           # static unroll; num_head is small
        nv_h = nv[:, :, h * C:(h + 1) * C]       # (TB, S, C) aligned lane slice
        a_h = a[h]                               # (TB, S)
        # scale by alpha and sum over the sample axis
        x_h = jnp.sum(nv_h * a_h[:, :, None], axis=1)                       # (TB, C)
        h1 = jnp.dot(x_h, w1t, preferred_element_type=jnp.float32) + b1     # (TB, hid)
        y_h = jnp.dot(h1, w2t, preferred_element_type=jnp.float32) + b2     # (TB, C)
        ys.append(y_h)
    y = ys[0] if H == 1 else jnp.concatenate(ys, axis=-1)                   # (TB, H*C)
    out_ref[...] = y.astype(out_ref.dtype)


def _pick_block_rows(S, H, C, hid, budget_bytes=16 * 1024 * 1024):
    """Largest row tile whose double-buffered working set fits the VMEM budget."""
    def rup(x, m):
        return ((x + m - 1) // m) * m
    hc_lanes = rup(H * C, 128)
    per_row = 4 * (2 * rup(S, 8) * hc_lanes      # neighbor_vecs tile (double-buffered)
                   + 2 * H * 128                 # alpha tile (S padded to one lane tile)
                   + 2 * hc_lanes)               # output tile (double-buffered)
    weights = 8 * (rup(C, 8) * rup(hid, 128) + rup(hid, 8) * rup(C, 128)
                   + rup(hid, 128) + rup(C, 128))
    tb = (budget_bytes - weights) // per_row
    tb = max(8, min(int(tb), 2048))
    return (tb // 8) * 8


def batch_mlp_aggregator(neighbor_vecs, alpha, params, *, num_sample, num_head=1,
                         need_softmax=False, block_rows=None,
                         vmem_limit_bytes=32 * 1024 * 1024):
    """neighbor_vecs: (B, S, H, C), alpha: (B, S, H). Returns (B, H, C)."""
    B, S, H, C = neighbor_vecs.shape
    assert S == num_sample and H == num_head
    w1, b1, w2, b2 = params                      # (hid, C), (hid,), (C, hid), (C,)
    hid = w1.shape[0]

    # Free reshape (no data movement): fold the head dim into the lane dim of the big tensor.
    nv2 = jnp.asarray(neighbor_vecs, jnp.float32).reshape(B, S, H * C)
    # alpha is tiny (1/C of the neighbor_vecs traffic): a cheap XLA transpose to (H, B, S)
    # gives the kernel a per-head sample axis without touching the big tensor.
    al2 = jnp.transpose(jnp.asarray(alpha, jnp.float32).reshape(B, S, H), (2, 0, 1))

    # Transpose the (loop-invariant) weights exactly once, outside the grid loop.
    w1t = jnp.asarray(w1, jnp.float32).T         # (C, hid)
    w2t = jnp.asarray(w2, jnp.float32).T         # (hid, C)
    b1r = jnp.asarray(b1, jnp.float32).reshape(1, hid)
    b2r = jnp.asarray(b2, jnp.float32).reshape(1, C)

    tb = _pick_block_rows(S, H, C, hid) if block_rows is None else int(block_rows)
    tb = max(1, min(tb, B))
    if tb < B:
        tb = max(8, (tb // 8) * 8)               # sublane-aligned row tile
    grid = (pl.cdiv(B, tb),)                     # tail blocks are clipped by Pallas (row-independent math)

    kernel = functools.partial(_mlp_agg_kernel, num_head=H, in_channels=C,
                               need_softmax=need_softmax)
    out = pl.pallas_call(
        kernel,
        out_shape=jax.ShapeDtypeStruct((B, H * C), jnp.float32),
        grid=grid,
        in_specs=[
            pl.BlockSpec((tb, S, H * C), lambda i: (i, 0, 0)),   # neighbor_vecs tile
            pl.BlockSpec((H, tb, S), lambda i: (0, i, 0)),       # alpha tile
            pl.BlockSpec((C, hid), lambda i: (0, 0)),            # weights stay resident
            pl.BlockSpec((1, hid), lambda i: (0, 0)),
            pl.BlockSpec((hid, C), lambda i: (0, 0)),
            pl.BlockSpec((1, C), lambda i: (0, 0)),
        ],
        out_specs=pl.BlockSpec((tb, H * C), lambda i: (i, 0)),   # lane-dense output slab
        compiler_params=pltpu.CompilerParams(
            dimension_semantics=("parallel",),
            vmem_limit_bytes=vmem_limit_bytes),
    )(nv2, al2, w1t, b1r, w2t, b2r)
    return out.reshape(B, H, C)


def _reference(neighbor_vecs, alpha, params, *, num_sample, num_head, need_softmax):
    B, S, H, C = neighbor_vecs.shape
    w1, b1, w2, b2 = params
    a = alpha.reshape(B, num_sample, num_head)
    if need_softmax:
        a = jax.nn.softmax(a, axis=-2)
    out = neighbor_vecs * a[..., None]           # (B, S, H, C)
    out = out.sum(axis=1)                        # (B, H, C)
    out = jnp.dot(out, w1.T, precision="highest") + b1
    out = jnp.dot(out, w2.T, precision="highest") + b2
    return out


if __name__ == "__main__":
    key = jax.random.PRNGKey(0)
    B, S, H, C, HID = 64, 8, 2, 128, 128         # batch, num_sample, num_head, in_channels, hidden_dim

    k_nv, k_a, k_w1, k_w2 = jax.random.split(key, 4)
    neighbor_vecs = jax.random.normal(k_nv, (B, S, H, C), dtype=jnp.float32)
    alpha = jax.random.normal(k_a, (B, S, H), dtype=jnp.float32)

    w1 = jax.random.uniform(k_w1, (HID, C), jnp.float32, -1.0, 1.0) * (6.0 / (HID + C)) ** 0.5
    b1 = 0.1 * jax.random.normal(jax.random.PRNGKey(1), (HID,), jnp.float32)
    w2 = jax.random.uniform(k_w2, (C, HID), jnp.float32, -1.0, 1.0) * (6.0 / (C + HID)) ** 0.5
    b2 = 0.1 * jax.random.normal(jax.random.PRNGKey(2), (C,), jnp.float32)
    params = (w1, b1, w2, b2)

    # Multi-head + softmax path; block_rows=16 forces a 4-step pipelined grid at these small shapes.
    out = batch_mlp_aggregator(neighbor_vecs, alpha, params, num_sample=S, num_head=H,
                               need_softmax=True, block_rows=16)
    out = jax.block_until_ready(out)
    ref = _reference(neighbor_vecs, alpha, params, num_sample=S, num_head=H, need_softmax=True)
    assert out.shape == (B, H, C)
    assert jnp.allclose(out, ref, atol=2e-3, rtol=2e-3)

    # Single-head, no-softmax path with the automatically derived tile size.
    nv1, al1 = neighbor_vecs[:, :, :1, :], alpha[:, :, :1]
    out1 = batch_mlp_aggregator(nv1, al1, params, num_sample=S, num_head=1, need_softmax=False)
    out1 = jax.block_until_ready(out1)
    ref1 = _reference(nv1, al1, params, num_sample=S, num_head=1, need_softmax=False)
    assert out1.shape == (B, 1, C)
    assert jnp.allclose(out1, ref1, atol=2e-3, rtol=2e-3)

    print("KERNEL_OK")
</pallas_src>

<mosaic_0001>
module attributes {stable_mosaic.version = 11 : i64} {
  func.func @_mlp_agg_kernel(%arg0: i32, %arg1: memref<16x8x256xf32, #tpu.memory_space<vmem>>, %arg2: memref<2x16x8xf32, #tpu.memory_space<vmem>>, %arg3: memref<128x128xf32, #tpu.memory_space<vmem>>, %arg4: memref<1x128xf32, #tpu.memory_space<vmem>>, %arg5: memref<128x128xf32, #tpu.memory_space<vmem>>, %arg6: memref<1x128xf32, #tpu.memory_space<vmem>>, %arg7: memref<16x256xf32, #tpu.memory_space<vmem>>) attributes {dimension_semantics = [#tpu.dimension_semantics<parallel>], iteration_bounds = array<i64: 4>, scalar_prefetch = 0 : i64, scratch_operands = 0 : i64, tpu.core_type = #tpu.core_type<tc>, window_params = [{transform_indices = @transform_0, window_bounds = array<i64: 16, 8, 256>}, {transform_indices = @transform_1, window_bounds = array<i64: 2, 16, 8>}, {pipeline_mode = #tpu.pipeline_mode<synchronous>, transform_indices = @transform_2, window_bounds = array<i64: 128, 128>}, {pipeline_mode = #tpu.pipeline_mode<synchronous>, transform_indices = @transform_3, window_bounds = array<i64: 1, 128>}, {pipeline_mode = #tpu.pipeline_mode<synchronous>, transform_indices = @transform_4, window_bounds = array<i64: 128, 128>}, {pipeline_mode = #tpu.pipeline_mode<synchronous>, transform_indices = @transform_5, window_bounds = array<i64: 1, 128>}, {transform_indices = @transform_6, window_bounds = array<i64: 16, 256>}]} {
    %c0 = arith.constant 0 : index
    %c0_0 = arith.constant 0 : index
    %c0_1 = arith.constant 0 : index
    %0 = vector.load %arg2[%c0, %c0_0, %c0_1] : memref<2x16x8xf32, #tpu.memory_space<vmem>>, vector<2x16x8xf32>
    %cst = arith.constant dense<0xFF800000> : vector<2x16xf32>
    %1 = vector.multi_reduction <maximumf>, %0, %cst [2] : vector<2x16x8xf32> to vector<2x16xf32>
    %cst_2 = arith.constant 0xFF800000 : f32
    %2 = vector.broadcast %cst_2 : f32 to vector<2x16xf32>
    %3 = arith.maximumf %2, %1 : vector<2x16xf32>
    %4 = vector.shape_cast %3 : vector<2x16xf32> to vector<2x16x1xf32>
    %5 = vector.broadcast %4 : vector<2x16x1xf32> to vector<2x16x8xf32>
    %6 = arith.subf %0, %5 : vector<2x16x8xf32>
    %7 = math.exp %6 : vector<2x16x8xf32>
    %cst_3 = arith.constant dense<0.000000e+00> : vector<2x16xf32>
    %8 = vector.multi_reduction <add>, %7, %cst_3 [2] : vector<2x16x8xf32> to vector<2x16xf32>
    %9 = vector.shape_cast %8 : vector<2x16xf32> to vector<2x16x1xf32>
    %10 = vector.broadcast %9 : vector<2x16x1xf32> to vector<2x16x8xf32>
    %11 = arith.divf %7, %10 : vector<2x16x8xf32>
    %c0_4 = arith.constant 0 : index
    %c0_5 = arith.constant 0 : index
    %c0_6 = arith.constant 0 : index
    %12 = vector.load %arg1[%c0_4, %c0_5, %c0_6] : memref<16x8x256xf32, #tpu.memory_space<vmem>>, vector<16x8x256xf32>
    %c0_7 = arith.constant 0 : index
    %c0_8 = arith.constant 0 : index
    %13 = vector.load %arg3[%c0_7, %c0_8] : memref<128x128xf32, #tpu.memory_space<vmem>>, vector<128x128xf32>
    %c0_9 = arith.constant 0 : index
    %c0_10 = arith.constant 0 : index
    %14 = vector.load %arg4[%c0_9, %c0_10] : memref<1x128xf32, #tpu.memory_space<vmem>>, vector<1x128xf32>
    %c0_11 = arith.constant 0 : index
    %c0_12 = arith.constant 0 : index
    %15 = vector.load %arg5[%c0_11, %c0_12] : memref<128x128xf32, #tpu.memory_space<vmem>>, vector<128x128xf32>
    %c0_13 = arith.constant 0 : index
    %c0_14 = arith.constant 0 : index
    %16 = vector.load %arg6[%c0_13, %c0_14] : memref<1x128xf32, #tpu.memory_space<vmem>>, vector<1x128xf32>
    %17 = vector.extract_strided_slice %12 {offsets = [0, 0, 0], sizes = [16, 8, 128], strides = [1, 1, 1]} : vector<16x8x256xf32> to vector<16x8x128xf32>
    %18 = vector.extract_strided_slice %11 {offsets = [0, 0, 0], sizes = [1, 16, 8], strides = [1, 1, 1]} : vector<2x16x8xf32> to vector<1x16x8xf32>
    %19 = vector.shape_cast %18 : vector<1x16x8xf32> to vector<16x8xf32>
    %20 = vector.shape_cast %19 : vector<16x8xf32> to vector<16x8x1xf32>
    %21 = vector.broadcast %20 : vector<16x8x1xf32> to vector<16x8x128xf32>
    %22 = arith.mulf %17, %21 : vector<16x8x128xf32>
    %cst_15 = arith.constant dense<0.000000e+00> : vector<16x128xf32>
    %23 = vector.multi_reduction <add>, %22, %cst_15 [1] : vector<16x8x128xf32> to vector<16x128xf32>
    %cst_16 = arith.constant dense<0.000000e+00> : vector<16x128xf32>
    %24 = tpu.matmul %23, %13, %cst_16 {dimension_numbers = #tpu.dot_dimension_numbers<[1], [0], [0], [1], [0, 0, 1, 1], [], []>} : vector<16x128xf32>, vector<128x128xf32>, vector<16x128xf32> -> vector<16x128xf32>
    %25 = vector.broadcast %14 : vector<1x128xf32> to vector<16x128xf32>
    %26 = arith.addf %24, %25 : vector<16x128xf32>
    %cst_17 = arith.constant dense<0.000000e+00> : vector<16x128xf32>
    %27 = tpu.matmul %26, %15, %cst_17 {dimension_numbers = #tpu.dot_dimension_numbers<[1], [0], [0], [1], [0, 0, 1, 1], [], []>} : vector<16x128xf32>, vector<128x128xf32>, vector<16x128xf32> -> vector<16x128xf32>
    %28 = vector.broadcast %16 : vector<1x128xf32> to vector<16x128xf32>
    %29 = arith.addf %27, %28 : vector<16x128xf32>
    %30 = vector.extract_strided_slice %12 {offsets = [0, 0, 128], sizes = [16, 8, 128], strides = [1, 1, 1]} : vector<16x8x256xf32> to vector<16x8x128xf32>
    %31 = vector.extract_strided_slice %11 {offsets = [1, 0, 0], sizes = [1, 16, 8], strides = [1, 1, 1]} : vector<2x16x8xf32> to vector<1x16x8xf32>
    %32 = vector.shape_cast %31 : vector<1x16x8xf32> to vector<16x8xf32>
    %33 = vector.shape_cast %32 : vector<16x8xf32> to vector<16x8x1xf32>
    %34 = vector.broadcast %33 : vector<16x8x1xf32> to vector<16x8x128xf32>
    %35 = arith.mulf %30, %34 : vector<16x8x128xf32>
    %cst_18 = arith.constant dense<0.000000e+00> : vector<16x128xf32>
    %36 = vector.multi_reduction <add>, %35, %cst_18 [1] : vector<16x8x128xf32> to vector<16x128xf32>
    %cst_19 = arith.constant dense<0.000000e+00> : vector<16x128xf32>
    %37 = tpu.matmul %36, %13, %cst_19 {dimension_numbers = #tpu.dot_dimension_numbers<[1], [0], [0], [1], [0, 0, 1, 1], [], []>} : vector<16x128xf32>, vector<128x128xf32>, vector<16x128xf32> -> vector<16x128xf32>
    %38 = vector.broadcast %14 : vector<1x128xf32> to vector<16x128xf32>
    %39 = arith.addf %37, %38 : vector<16x128xf32>
    %cst_20 = arith.constant dense<0.000000e+00> : vector<16x128xf32>
    %40 = tpu.matmul %39, %15, %cst_20 {dimension_numbers = #tpu.dot_dimension_numbers<[1], [0], [0], [1], [0, 0, 1, 1], [], []>} : vector<16x128xf32>, vector<128x128xf32>, vector<16x128xf32> -> vector<16x128xf32>
    %41 = vector.broadcast %16 : vector<1x128xf32> to vector<16x128xf32>
    %42 = arith.addf %40, %41 : vector<16x128xf32>
    %43 = tpu.concatenate %29, %42 in 1 : vector<16x128xf32>, vector<16x128xf32> -> vector<16x256xf32>
    %c0_21 = arith.constant 0 : index
    %c0_22 = arith.constant 0 : index
    %44 = vector.load %arg7[%c0_21, %c0_22] : memref<16x256xf32, #tpu.memory_space<vmem>>, vector<16x256xf32>
    tpu.vector_store %arg7[%c0_21, %c0_22], %43 {strides = array<i32>} : memref<16x256xf32, #tpu.memory_space<vmem>>, vector<16x256xf32>,
    return
  }
  func.func @transform_0(%arg0: i32) -> (i32, i32, i32) {
    %c0_i32 = arith.constant 0 : i32
    %c0_i32_0 = arith.constant 0 : i32
    %c0_i32_1 = arith.constant 0 : i32
    return %arg0, %c0_i32, %c0_i32_0 : i32, i32, i32
  }
  func.func @transform_1(%arg0: i32) -> (i32, i32, i32) {
    %c0_i32 = arith.constant 0 : i32
    %c0_i32_0 = arith.constant 0 : i32
    %c0_i32_1 = arith.constant 0 : i32
    return %c0_i32, %arg0, %c0_i32_0 : i32, i32, i32
  }
  func.func @transform_2(%arg0: i32) -> (i32, i32) {
    %c0_i32 = arith.constant 0 : i32
    %c0_i32_0 = arith.constant 0 : i32
    %c0_i32_1 = arith.constant 0 : i32
    return %c0_i32, %c0_i32_0 : i32, i32
  }
  func.func @transform_3(%arg0: i32) -> (i32, i32) {
    %c0_i32 = arith.constant 0 : i32
    %c0_i32_0 = arith.constant 0 : i32
    %c0_i32_1 = arith.constant 0 : i32
    return %c0_i32, %c0_i32_0 : i32, i32
  }
  func.func @transform_4(%arg0: i32) -> (i32, i32) {
    %c0_i32 = arith.constant 0 : i32
    %c0_i32_0 = arith.constant 0 : i32
    %c0_i32_1 = arith.constant 0 : i32
    return %c0_i32, %c0_i32_0 : i32, i32
  }
  func.func @transform_5(%arg0: i32) -> (i32, i32) {
    %c0_i32 = arith.constant 0 : i32
    %c0_i32_0 = arith.constant 0 : i32
    %c0_i32_1 = arith.constant 0 : i32
    return %c0_i32, %c0_i32_0 : i32, i32
  }
  func.func @transform_6(%arg0: i32) -> (i32, i32) {
    %c0_i32 = arith.constant 0 : i32
    %c0_i32_0 = arith.constant 0 : i32
    return %arg0, %c0_i32 : i32, i32
  }
}

</mosaic_0001>

<llo_original>
// kernel: tpu_custom_call.1
$region0: #{tpu_custom_call.1}
  #allocation0 [shape = 'u32[]', space=smem, size = 0x4, offset = 0x4, fixed_abs, tag = 'smem constant byte address 0x4 - core index']
  #allocation1 [shape = 'u32[144,128]{1,0:T(1,128)}', space=vmem, size = 0x12000, scoped, tag = 'internal scratch']
  %s0 = inlined_call_operand.hbm [shape: f32[64,8,256], index: 0, kind: input, shape index: {}]
  %s1 = inlined_call_operand.vmem [shape: f32[2,64,8], index: 1, kind: input, shape index: {}]
  %s2 = inlined_call_operand.vmem [shape: f32[128,128], index: 2, kind: input, shape index: {}]
  %s3 = inlined_call_operand.vmem [shape: f32[1,128], index: 3, kind: input, shape index: {}]
  %s4 = inlined_call_operand.hbm [shape: f32[128,128], index: 4, kind: input, shape index: {}]
  %s5 = inlined_call_operand.vmem [shape: f32[1,128], index: 5, kind: input, shape index: {}]
  %s6 = inlined_call_operand.hbm [shape: f32[64,256], index: 6, kind: output, shape index: {}]
  %s7 = sld [smem:[#allocation0]]
  $region103: #{tpu_custom_call.1} parent=0
    _
  %s9 = ssub.s32 1, %s7
  %s10 = scalar_select 0, %s9, %s7
  $region1: #{tpu_custom_call.1} parent=0
    #allocation2 [shape = 'u8[262144]{0}', space=vmem, size = 0x40000, scoped, tag = 'input window, operand 0']
    #allocation3 [shape = 's32[2]{0}', space=sflag, size = 0x8, scoped, tag = 'scoped memory for tpu_custom_call.1']
    #allocation4 [shape = 's32[2]{0}', space=sflag, size = 0x8, scoped, tag = 'scoped memory for tpu_custom_call.1']
    #allocation5 [shape = 'u8[32768]{0}', space=vmem, size = 0x8000, scoped, tag = 'input window, operand 1']
    #allocation6 [shape = 'u8[65536]{0}', space=vmem, size = 0x10000, scoped, tag = 'input window, operand 4, single buffered']
    #allocation7 [shape = 's32[1]{0}', space=sflag, size = 0x4, scoped, tag = 'scoped memory for tpu_custom_call.1']
    #allocation8 [shape = 'u8[32768]{0}', space=vmem, size = 0x8000, scoped, tag = 'output window, operand 0']
    %11 = vsyncpa [#allocation3], 0
    %s12 = scalar_lea.sflag [#allocation3], 1
    %13 = vsyncpa %s12, 0
    %14 = vsyncpa [#allocation7], 0
    %15 = vsyncpa [#allocation4], 0
    %s16 = scalar_lea.sflag [#allocation4], 1
    %17 = vsyncpa %s16, 0
    loop: start=0, step=1, limit=6
    $region2: #{tpu_custom_call.1} parent=1 // loop_pre_header
      _
    $region3: #{tpu_custom_call.1} parent=1 // loop_header
      %s19 = sphi 0, %s23
      %p20 = scmp.ge.s32.totalorder %s19, 6
      %s29 = sphi 0, %s31
      %s32 = sphi 0, %s29
      %s33 = sphi 0, %s32
      %s49 = sphi 0, %s33
      %s55 = sphi 0, %s57
      %s58 = sphi 0, %s55
      %s59 = sphi 0, %s58
      %s75 = sphi 0, %s59
      %s79 = sphi 0, %s79
      %s81 = sphi 0, %s79
      %s82 = sphi 0, %s81
      %s96 = sphi 0, %s82
      %s100 = sphi 0, %s100
      %s102 = sphi 0, %s100
      %s103 = sphi 0, %s102
      %s117 = sphi 0, %s103
      %s121 = sphi 0, %s121
      %s123 = sphi 0, %s121
      %s124 = sphi 0, %s123
      %s138 = sphi 0, %s124
      %s142 = sphi 0, %s142
      %s144 = sphi 0, %s142
      %s145 = sphi 0, %s144
      %s159 = sphi 0, %s145
      %s165 = sphi 0, %s167
      %s168 = sphi 0, %s165
      %s169 = sphi 0, %s168
      %s185 = sphi 0, %s169
    $region4: #{tpu_custom_call.1} parent=1 // loop_header_branch
      %22 = sbr.rel (%p20) target = $region8
    $region5: #{tpu_custom_call.1} parent=1 // loop_body
      %s24 = ssub.s32 %s19, 1
      %s25 = ssub.s32 %s19, 2
      %s26 = sadd.s32 %s19, 1
      %s27 = ssub.s32 %s19, %s26
      %p28 = scmp.eq.s32.totalorder %s27, 0
      %s30 = sadd.s32 %s29, 1
      %s31 = scalar_select %p28, %s29, %s30
      %p34 = pneg %p28
      %p35 = scmp.eq.s32.totalorder %s19, 3
      %p36 = por %p34, %p35
      %p37 = scmp.ne.s32.totalorder %s29, %s32
      %p38 = scmp.eq.s32.totalorder %s19, 0
      %p39 = por %p37, %p38
      %p40 = scmp.ne.s32.totalorder %s29, %s32
      %p41 = scmp.eq.s32.totalorder %s24, 3
      %p42 = por %p40, %p41
      %p43 = scmp.ne.s32.totalorder %s32, %s33
      %p44 = scmp.eq.s32.totalorder %s24, 0
      %p45 = por %p43, %p44
      %p46 = scmp.ne.s32.totalorder %s32, %s33
      %p47 = scmp.eq.s32.totalorder %s25, 3
      %p48 = por %p46, %p47
      %p50 = scmp.ne.s32.totalorder %s33, %s49
      %p51 = scmp.eq.s32.totalorder %s25, 0
      %p52 = por %p50, %p51
      %s53 = ssub.s32 %s19, %s26
      %p54 = scmp.eq.s32.totalorder %s53, 0
      %s56 = sadd.s32 %s55, 1
      %s57 = scalar_select %p54, %s55, %s56
      %p60 = pneg %p54
      %p61 = scmp.eq.s32.totalorder %s19, 3
      %p62 = por %p60, %p61
      %p63 = scmp.ne.s32.totalorder %s55, %s58
      %p64 = scmp.eq.s32.totalorder %s19, 0
      %p65 = por %p63, %p64
      %p66 = scmp.ne.s32.totalorder %s55, %s58
      %p67 = scmp.eq.s32.totalorder %s24, 3
      %p68 = por %p66, %p67
      %p69 = scmp.ne.s32.totalorder %s58, %s59
      %p70 = scmp.eq.s32.totalorder %s24, 0
      %p71 = por %p69, %p70
      %p72 = scmp.ne.s32.totalorder %s58, %s59
      %p73 = scmp.eq.s32.totalorder %s25, 3
      %p74 = por %p72, %p73
      %p76 = scmp.ne.s32.totalorder %s59, %s75
      %p77 = scmp.eq.s32.totalorder %s25, 0
      %p78 = por %p76, %p77
      %s80 = sadd.s32 %s79, 1
      %p83 = scmp.eq.s32.totalorder %s19, 3
      %p84 = scmp.ne.s32.totalorder %s79, %s81
      %p85 = scmp.eq.s32.totalorder %s19, 0
      %p86 = por %p84, %p85
      %p87 = scmp.ne.s32.totalorder %s79, %s81
      %p88 = scmp.eq.s32.totalorder %s24, 3
      %p89 = por %p87, %p88
      %p90 = scmp.ne.s32.totalorder %s81, %s82
      %p91 = scmp.eq.s32.totalorder %s24, 0
      %p92 = por %p90, %p91
      %p93 = scmp.ne.s32.totalorder %s81, %s82
      %p94 = scmp.eq.s32.totalorder %s25, 3
      %p95 = por %p93, %p94
      %p97 = scmp.ne.s32.totalorder %s82, %s96
      %p98 = scmp.eq.s32.totalorder %s25, 0
      %p99 = por %p97, %p98
      %s101 = sadd.s32 %s100, 1
      %p104 = scmp.eq.s32.totalorder %s19, 3
      %p105 = scmp.ne.s32.totalorder %s100, %s102
      %p106 = scmp.eq.s32.totalorder %s19, 0
      %p107 = por %p105, %p106
      %p108 = scmp.ne.s32.totalorder %s100, %s102
      %p109 = scmp.eq.s32.totalorder %s24, 3
      %p110 = por %p108, %p109
      %p111 = scmp.ne.s32.totalorder %s102, %s103
      %p112 = scmp.eq.s32.totalorder %s24, 0
      %p113 = por %p111, %p112
      %p114 = scmp.ne.s32.totalorder %s102, %s103
      %p115 = scmp.eq.s32.totalorder %s25, 3
      %p116 = por %p114, %p115
      %p118 = scmp.ne.s32.totalorder %s103, %s117
      %p119 = scmp.eq.s32.totalorder %s25, 0
      %p120 = por %p118, %p119
      %s122 = sadd.s32 %s121, 1
      %p125 = scmp.eq.s32.totalorder %s19, 3
      %p126 = scmp.ne.s32.totalorder %s121, %s123
      %p127 = scmp.eq.s32.totalorder %s19, 0
      %p128 = por %p126, %p127
      %p129 = scmp.ne.s32.totalorder %s121, %s123
      %p130 = scmp.eq.s32.totalorder %s24, 3
      %p131 = por %p129, %p130
      %p132 = scmp.ne.s32.totalorder %s123, %s124
      %p133 = scmp.eq.s32.totalorder %s24, 0
      %p134 = por %p132, %p133
      %p135 = scmp.ne.s32.totalorder %s123, %s124
      %p136 = scmp.eq.s32.totalorder %s25, 3
      %p137 = por %p135, %p136
      %p139 = scmp.ne.s32.totalorder %s124, %s138
      %p140 = scmp.eq.s32.totalorder %s25, 0
      %p141 = por %p139, %p140
      %s143 = sadd.s32 %s142, 1
      %p146 = scmp.eq.s32.totalorder %s19, 3
      %p147 = scmp.ne.s32.totalorder %s142, %s144
      %p148 = scmp.eq.s32.totalorder %s19, 0
      %p149 = por %p147, %p148
      %p150 = scmp.ne.s32.totalorder %s142, %s144
      %p151 = scmp.eq.s32.totalorder %s24, 3
      %p152 = por %p150, %p151
      %p153 = scmp.ne.s32.totalorder %s144, %s145
      %p154 = scmp.eq.s32.totalorder %s24, 0
      %p155 = por %p153, %p154
      %p156 = scmp.ne.s32.totalorder %s144, %s145
      %p157 = scmp.eq.s32.totalorder %s25, 3
      %p158 = por %p156, %p157
      %p160 = scmp.ne.s32.totalorder %s145, %s159
      %p161 = scmp.eq.s32.totalorder %s25, 0
      %p162 = por %p160, %p161
      %s163 = ssub.s32 %s19, %s26
      %p164 = scmp.eq.s32.totalorder %s163, 0
      %s166 = sadd.s32 %s165, 1
      %s167 = scalar_select %p164, %s165, %s166
      %p170 = pneg %p164
      %p171 = scmp.eq.s32.totalorder %s19, 3
      %p172 = por %p170, %p171
      %p173 = scmp.ne.s32.totalorder %s165, %s168
      %p174 = scmp.eq.s32.totalorder %s19, 0
      %p175 = por %p173, %p174
      %p176 = scmp.ne.s32.totalorder %s165, %s168
      %p177 = scmp.eq.s32.totalorder %s24, 3
      %p178 = por %p176, %p177
      %p179 = scmp.ne.s32.totalorder %s168, %s169
      %p180 = scmp.eq.s32.totalorder %s24, 0
      %p181 = por %p179, %p180
      %p182 = scmp.ne.s32.totalorder %s168, %s169
      %p183 = scmp.eq.s32.totalorder %s25, 3
      %p184 = por %p182, %p183
      %p186 = scmp.ne.s32.totalorder %s169, %s185
      %p187 = scmp.eq.s32.totalorder %s25, 0
      %p188 = por %p186, %p187
      %p189 = scmp.le.s32.totalorder 1, %s19
      %p190 = scmp.lt.s32.totalorder %s19, 5
      %p191 = pnand %p189, %p190
      %p192 = pneg %p191
      // Predicated region
      $region9: #{tpu_custom_call.1} parent=5 // pred_check
        _
      $region10: #{tpu_custom_call.1} parent=5 // pred_check_branch
        %194 = sbr.rel (%p191) target = $region12
      $region11: #{tpu_custom_call.1} parent=5 // pred_region
        %s195 = ssub.s32 %s19, 1
        // Predicated region
        $region13: #{tpu_custom_call.1} parent=11 // pred_check
          %p196 = pneg %p92
        $region14: #{tpu_custom_call.1} parent=11 // pred_check_branch
          %198 = sbr.rel (%p196) target = $region16
        $region15: #{tpu_custom_call.1} parent=11 // pred_region
          _
        $region16: #{tpu_custom_call.1} parent=11 // pred_fallthru
          _
        // Predicated region
        $region17: #{tpu_custom_call.1} parent=11 // pred_check
          %p199 = pneg %p113
        $region18: #{tpu_custom_call.1} parent=11 // pred_check_branch
          %201 = sbr.rel (%p199) target = $region20
        $region19: #{tpu_custom_call.1} parent=11 // pred_region
          _
        $region20: #{tpu_custom_call.1} parent=11 // pred_fallthru
          _
        // Predicated region
        $region21: #{tpu_custom_call.1} parent=11 // pred_check
          %p202 = pneg %p134
        $region22: #{tpu_custom_call.1} parent=11 // pred_check_branch
          %204 = sbr.rel (%p202) target = $region24
        $region23: #{tpu_custom_call.1} parent=11 // pred_region
          %s206 = ssub.s32 2048, 2048
          %207 = vsyncadd [#allocation7], %s206
          %s208 = sshll.u32 [#allocation6], 4
          %s209 = int_to_ptr.vmem [resolvable:$true] %s208
          %214 = dma.hbm_to_vmem [thread:$0]  %s4, 2048, %s209, [#allocation7], 128, 128, 8
        $region24: #{tpu_custom_call.1} parent=11 // pred_fallthru
          _
        // Predicated region
        $region25: #{tpu_custom_call.1} parent=11 // pred_check
          %p215 = pneg %p155
        $region26: #{tpu_custom_call.1} parent=11 // pred_check_branch
          %217 = sbr.rel (%p215) target = $region28
        $region27: #{tpu_custom_call.1} parent=11 // pred_region
          _
        $region28: #{tpu_custom_call.1} parent=11 // pred_fallthru
          _
      $region12: #{tpu_custom_call.1} parent=5 // pred_fallthru
        _
      %p218 = scmp.lt.s32.totalorder %s19, 4
      // Predicated region
      $region29: #{tpu_custom_call.1} parent=5 // pred_check
        %p219 = pneg %p218
      $region30: #{tpu_custom_call.1} parent=5 // pred_check_branch
        %221 = sbr.rel (%p219) target = $region32
      $region31: #{tpu_custom_call.1} parent=5 // pred_region
        // Predicated region
        $region33: #{tpu_custom_call.1} parent=31 // pred_check
          %p222 = pneg %p39
        $region34: #{tpu_custom_call.1} parent=31 // pred_check_branch
          %224 = sbr.rel (%p222) target = $region36
        $region35: #{tpu_custom_call.1} parent=31 // pred_region
          %s225 = sand.u32 %s29, 1
          %s226 = scalar_lea.sflag [#allocation3], %s225
          %s227 = sand.u32 %s29, 1
          %s228 = smul.addr %s227, 256
          %s229 = scalar_lea.vmem [#allocation2], %s228
          %s230 = smul.u32 16, %s19
          %s232 = ssub.s32 4096, 4096
          %233 = vsyncadd %s226, %s232
          %s234 = smul.addr %s230, 2
          %s235 = smul.addr %s234, 128
          %s236 = scalar_lea.hbm %s0, %s235
          %s237 = sshll.u32 %s229, 4
          %s238 = int_to_ptr.vmem [resolvable:$true] %s237
          %243 = dma.hbm_to_vmem [thread:$0]  %s236, 4096, %s238, %s226, 256, 256, 16
        $region36: #{tpu_custom_call.1} parent=31 // pred_fallthru
          _
        // Predicated region
        $region37: #{tpu_custom_call.1} parent=31 // pred_check
          %p244 = pneg %p65
        $region38: #{tpu_custom_call.1} parent=31 // pred_check_branch
          %246 = sbr.rel (%p244) target = $region40
        $region39: #{tpu_custom_call.1} parent=31 // pred_region
          %s247 = sand.u32 %s55, 1
          %s248 = sand.u32 %s55, 1
          %s249 = smul.addr %s248, 32
          %s250 = scalar_lea.vmem [#allocation5], %s249
          %s251 = smul.u32 2, %s19
          %s252 = smul.addr %s251, 8
          %s253 = scalar_lea.vmem %s1, %s252
          // Predicated region
          $region41: #{tpu_custom_call.1} parent=39 // pred_check
            _
          $region42: #{tpu_custom_call.1} parent=39 // pred_check_branch
            %255 = sbr.rel (0) target = $region44
          $region43: #{tpu_custom_call.1} parent=39 // pred_region
            // Predicated region
            $region45: #{tpu_custom_call.1} parent=43 // pred_check
              _
            $region46: #{tpu_custom_call.1} parent=43 // pred_check_branch
              %257 = sbr.rel (0) target = $region48
            $region47: #{tpu_custom_call.1} parent=43 // pred_region
              // Predicated region
              $region60: #{tpu_custom_call.1} parent=47 // pred_check
                _
              $region61: #{tpu_custom_call.1} parent=47 // pred_check_branch
                %278 = sbr.rel (0) target = $region63
              $region62: #{tpu_custom_call.1} parent=47 // pred_region
                loop: start=0, step=1, limit=1
                $region64: #{tpu_custom_call.1} parent=62 // loop_pre_header
                  _
                $region65: #{tpu_custom_call.1} parent=62 // loop_header
                  %s280 = sphi 0, %s284
                  %p281 = scmp.ge.s32.totalorder %s280, 1
                  %s285 = sphi %s253, %s253
                  %s286 = sphi %s250, %s250
                $region66: #{tpu_custom_call.1} parent=62 // loop_header_branch
                  %283 = sbr.rel (%p281) target = $region70
                $region67: #{tpu_custom_call.1} parent=62 // loop_body
                  %v287 = vld [vmem:[%s285] sm:$0xff]
                  %288 = vst [vmem:[%s286] sm:$0xff] %v287
                  %v289 = vld [vmem:[%s285 + $0x8] sm:$0xff]
                  %290 = vst [vmem:[%s286 + $0x8] sm:$0xff] %v289
                  %v291 = vld [vmem:[%s285 + $0x40] sm:$0xff]
                  %292 = vst [vmem:[%s286 + $0x10] sm:$0xff] %v291
                  %v293 = vld [vmem:[%s285 + $0x48] sm:$0xff]
                  %294 = vst [vmem:[%s286 + $0x18] sm:$0xff] %v293
                $region68: #{tpu_custom_call.1} parent=62 // loop_footer
                  %s284 = sadd.s32 1, %s280
                $region69: #{tpu_custom_call.1} parent=62 // loop_footer_branch
                  %279 = sbr.rel target = $region65
                $region70: #{tpu_custom_call.1} parent=62 // loop_exit
                  _
              $region63: #{tpu_custom_call.1} parent=47 // pred_fallthru
                _
              // Predicated region
              $region71: #{tpu_custom_call.1} parent=47 // pred_check
                _
              $region72: #{tpu_custom_call.1} parent=47 // pred_check_branch
                %296 = sbr.rel target = $region74
              $region73: #{tpu_custom_call.1} parent=47 // pred_region
                _
              $region74: #{tpu_custom_call.1} parent=47 // pred_fallthru
                _
            $region48: #{tpu_custom_call.1} parent=43 // pred_fallthru
              _
            // Predicated region
            $region49: #{tpu_custom_call.1} parent=43 // pred_check
              _
            $region50: #{tpu_custom_call.1} parent=43 // pred_check_branch
              %259 = sbr.rel target = $region52
            $region51: #{tpu_custom_call.1} parent=43 // pred_region
              loop: start=0, step=1, limit=1
              $region53: #{tpu_custom_call.1} parent=51 // loop_pre_header
                _
              $region54: #{tpu_custom_call.1} parent=51 // loop_header
                %s262 = sphi 0, %s266
                %p263 = scmp.ge.s32.totalorder %s262, 1
                %s267 = sphi %s253, %s253
                %s268 = sphi %s250, %s250
              $region55: #{tpu_custom_call.1} parent=51 // loop_header_branch
                %265 = sbr.rel (%p263) target = $region59
              $region56: #{tpu_custom_call.1} parent=51 // loop_body
                %v269 = vld [vmem:[%s267] sm:$0xff]
                %270 = vst [vmem:[%s268] sm:$0xff] %v269
                %v271 = vld [vmem:[%s267 + $0x8] sm:$0xff]
                %272 = vst [vmem:[%s268 + $0x8] sm:$0xff] %v271
                %v273 = vld [vmem:[%s267 + $0x40] sm:$0xff]
                %274 = vst [vmem:[%s268 + $0x10] sm:$0xff] %v273
                %v275 = vld [vmem:[%s267 + $0x48] sm:$0xff]
                %276 = vst [vmem:[%s268 + $0x18] sm:$0xff] %v275
              $region57: #{tpu_custom_call.1} parent=51 // loop_footer
                %s266 = sadd.s32 1, %s262
              $region58: #{tpu_custom_call.1} parent=51 // loop_footer_branch
                %261 = sbr.rel target = $region54
              $region59: #{tpu_custom_call.1} parent=51 // loop_exit
                _
            $region52: #{tpu_custom_call.1} parent=43 // pred_fallthru
              _
          $region44: #{tpu_custom_call.1} parent=39 // pred_fallthru
            _
          %297 = vnop
        $region40: #{tpu_custom_call.1} parent=31 // pred_fallthru
          _
      $region32: #{tpu_custom_call.1} parent=5 // pred_fallthru
        _
      %p298 = scmp.le.s32.totalorder 1, %s19
      %p299 = scmp.lt.s32.totalorder %s19, 5
      %p300 = pnand %p298, %p299
      %p301 = pneg %p300
      // Predicated region
      $region75: #{tpu_custom_call.1} parent=5 // pred_check
        _
      $region76: #{tpu_custom_call.1} parent=5 // pred_check_branch
        %303 = sbr.rel (%p300) target = $region78
      $region77: #{tpu_custom_call.1} parent=5 // pred_region
        %s304 = ssub.s32 %s19, 1
        %s305 = sand.u32 %s32, 1
        %s306 = scalar_lea.sflag [#allocation3], %s305
        %s307 = sand.u32 %s32, 1
        %s308 = smul.addr %s307, 256
        %s309 = scalar_lea.vmem [#allocation2], %s308
        // Predicated region
        $region79: #{tpu_custom_call.1} parent=77 // pred_check
          %p310 = pneg %p45
        $region80: #{tpu_custom_call.1} parent=77 // pred_check_branch
          %312 = sbr.rel (%p310) target = $region82
        $region81: #{tpu_custom_call.1} parent=77 // pred_region
          %313 = dma.done %s306, 4096
        $region82: #{tpu_custom_call.1} parent=77 // pred_fallthru
          _
        %s314 = sand.u32 %s58, 1
        %s315 = sand.u32 %s58, 1
        %s316 = smul.addr %s315, 32
        %s317 = scalar_lea.vmem [#allocation5], %s316
        // Predicated region
        $region83: #{tpu_custom_call.1} parent=77 // pred_check
          %p318 = pneg %p71
        $region84: #{tpu_custom_call.1} parent=77 // pred_check_branch
          %320 = sbr.rel (%p318) target = $region86
        $region85: #{tpu_custom_call.1} parent=77 // pred_region
          _
        $region86: #{tpu_custom_call.1} parent=77 // pred_fallthru
          _
        // Predicated region
        $region87: #{tpu_custom_call.1} parent=77 // pred_check
          %p321 = pneg %p134
        $region88: #{tpu_custom_call.1} parent=77 // pred_check_branch
          %323 = sbr.rel (%p321) target = $region90
        $region89: #{tpu_custom_call.1} parent=77 // pred_region
          %324 = dma.done [#allocation7], 2048
        $region90: #{tpu_custom_call.1} parent=77 // pred_fallthru
          _
        %s325 = sand.u32 %s32, 1
        %s326 = scalar_lea.sflag [#allocation3], %s325
        %s327 = sand.u32 %s32, 1
        %s328 = smul.addr %s327, 256
        %s329 = scalar_lea.vmem [#allocation2], %s328
        %p330 = pneg %p45
        %p331 = pneg %p42
        %s332 = sand.u32 %s58, 1
        %s333 = sand.u32 %s58, 1
        %s334 = smul.addr %s333, 32
        %s335 = scalar_lea.vmem [#allocation5], %s334
        %p336 = pneg %p71
        %p337 = pneg %p68
        %p338 = pneg %p92
        %p339 = pneg %p89
        %p340 = pneg %p113
        %p341 = pneg %p110
        %p342 = pneg %p134
        %p343 = pneg %p131
        %p344 = pneg %p155
        %p345 = pneg %p152
        %p346 = pneg %p181
        %p347 = pneg %p178
        %s348 = sand.u32 %s168, 1
        %s349 = scalar_lea.sflag [#allocation4], %s348
        %s350 = sand.u32 %s168, 1
        %s351 = smul.addr %s350, 32
        %s352 = scalar_lea.vmem [#allocation8], %s351
        %s353 = smul.u32 16, %s24
        %s354 = smul.u32 2, %s24
        %s355 = smul.u32 2, %s24
        %v356 = vld [vmem:[%s317] sm:$0xff]
        %v357 = vld [vmem:[%s317 + $0x8] sm:$0xff]
        %v358 = vld [vmem:[%s317 + $0x10] sm:$0xff]
        %v359 = vld [vmem:[%s317 + $0x18] sm:$0xff]
        %vm360 = vcmask 64512
        %v361 = vsel %vm360, %v356, -inf
        %362 = vmax.xlane.f32.xlu0 %v361
        %v363 = vpop.xlane.xlu0 %362
        %v364 = vsel %vm360, %v357, -inf
        %365 = vmax.xlane.f32.xlu0 %v364
        %v366 = vpop.xlane.xlu0 %365
        %v367 = vsel %vm360, %v358, -inf
        %368 = vmax.xlane.f32.xlu0 %v367
        %v369 = vpop.xlane.xlu0 %368
        %v370 = vsel %vm360, %v359, -inf
        %371 = vmax.xlane.f32.xlu0 %v370
        %v372 = vpop.xlane.xlu0 %371
        %v373 = vsub.f32 %v356, %v363
        %v374 = vsub.f32 %v357, %v366
        %v375 = vsub.f32 %v358, %v369
        %v376 = vsub.f32 %v359, %v372
        %v377 = vmul.f32 %v373, 1.442695
        %v378 = vpow.pop %v377
        %v379 = vmul.f32 %v374, 1.442695
        %v380 = vpow.pop %v379
        %v381 = vmul.f32 %v375, 1.442695
        %v382 = vpow.pop %v381
        %v383 = vmul.f32 %v376, 1.442695
        %v384 = vpow.pop %v383
        %v385 = vsel %vm360, %v378, 0.0
        %386 = vadd.xlane.f32.xlu0 %v385
        %v387 = vpop.xlane.xlu0 %386
        %v388 = vsel %vm360, %v380, 0.0
        %389 = vadd.xlane.f32.xlu0 %v388
        %v390 = vpop.xlane.xlu0 %389
        %v391 = vsel %vm360, %v382, 0.0
        %392 = vadd.xlane.f32.xlu0 %v391
        %v393 = vpop.xlane.xlu0 %392
        %v394 = vsel %vm360, %v384, 0.0
        %395 = vadd.xlane.f32.xlu0 %v394
        %v396 = vpop.xlane.xlu0 %395
        %v397 = vrcp.pop %v387
        %v398 = vmul.f32 %v378, %v397
        %v399 = vrcp.pop %v390
        %v400 = vmul.f32 %v380, %v399
        %v401 = vrcp.pop %v393
        %v402 = vmul.f32 %v382, %v401
        %v403 = vrcp.pop %v396
        %v404 = vmul.f32 %v384, %v403
        %v405 = vld [vmem:[%s309] sm:$0xff]
        %v406 = vld [vmem:[%s309 + $0x8] sm:$0xff]
        %v407 = vld [vmem:[%s309 + $0x10] sm:$0xff]
        %v408 = vld [vmem:[%s309 + $0x18] sm:$0xff]
        %v409 = vld [vmem:[%s309 + $0x20] sm:$0xff]
        %v410 = vld [vmem:[%s309 + $0x28] sm:$0xff]
        %v411 = vld [vmem:[%s309 + $0x30] sm:$0xff]
        %v412 = vld [vmem:[%s309 + $0x38] sm:$0xff]
        %v413 = vld [vmem:[%s309 + $0x40] sm:$0xff]
        %v414 = vld [vmem:[%s309 + $0x48] sm:$0xff]
        %v415 = vld [vmem:[%s309 + $0x50] sm:$0xff]
        %v416 = vld [vmem:[%s309 + $0x58] sm:$0xff]
        %v417 = vld [vmem:[%s309 + $0x60] sm:$0xff]
        %v418 = vld [vmem:[%s309 + $0x68] sm:$0xff]
        %v419 = vld [vmem:[%s309 + $0x70] sm:$0xff]
        %v420 = vld [vmem:[%s309 + $0x78] sm:$0xff]
        %v421 = vld [vmem:[%s309 + $0x80] sm:$0xff]
        %v422 = vld [vmem:[%s309 + $0x88] sm:$0xff]
        %v423 = vld [vmem:[%s309 + $0x90] sm:$0xff]
        %v424 = vld [vmem:[%s309 + $0x98] sm:$0xff]
        %v425 = vld [vmem:[%s309 + $0xa0] sm:$0xff]
        %v426 = vld [vmem:[%s309 + $0xa8] sm:$0xff]
        %v427 = vld [vmem:[%s309 + $0xb0] sm:$0xff]
        %v428 = vld [vmem:[%s309 + $0xb8] sm:$0xff]
        %v429 = vld [vmem:[%s309 + $0xc0] sm:$0xff]
        %v430 = vld [vmem:[%s309 + $0xc8] sm:$0xff]
        %v431 = vld [vmem:[%s309 + $0xd0] sm:$0xff]
        %v432 = vld [vmem:[%s309 + $0xd8] sm:$0xff]
        %v433 = vld [vmem:[%s309 + $0xe0] sm:$0xff]
        %v434 = vld [vmem:[%s309 + $0xe8] sm:$0xff]
        %v435 = vld [vmem:[%s309 + $0xf0] sm:$0xff]
        %v436 = vld [vmem:[%s309 + $0xf8] sm:$0xff]
        %v437 = vld [vmem:[%s2] sm:$0xff]
        %v438 = vld [vmem:[%s2 + $0x8] sm:$0xff]
        %v439 = vld [vmem:[%s2 + $0x10] sm:$0xff]
        %v440 = vld [vmem:[%s2 + $0x18] sm:$0xff]
        %v441 = vld [vmem:[%s2 + $0x20] sm:$0xff]
        %v442 = vld [vmem:[%s2 + $0x28] sm:$0xff]
        %v443 = vld [vmem:[%s2 + $0x30] sm:$0xff]
        %v444 = vld [vmem:[%s2 + $0x38] sm:$0xff]
        %v445 = vld [vmem:[%s2 + $0x40] sm:$0xff]
        %v446 = vld [vmem:[%s2 + $0x48] sm:$0xff]
        %v447 = vld [vmem:[%s2 + $0x50] sm:$0xff]
        %v448 = vld [vmem:[%s2 + $0x58] sm:$0xff]
        %v449 = vld [vmem:[%s2 + $0x60] sm:$0xff]
        %v450 = vld [vmem:[%s2 + $0x68] sm:$0xff]
        %v451 = vld [vmem:[%s2 + $0x70] sm:$0xff]
        %v452 = vld [vmem:[%s2 + $0x78] sm:$0xff]
        %v453 = vld [vmem:[%s3] sm:$0x1]
        %v454 = vld [vmem:[#allocation6] sm:$0xff]
        %v455 = vld [vmem:[#allocation6 + $0x8] sm:$0xff]
        %v456 = vld [vmem:[#allocation6 + $0x10] sm:$0xff]
        %v457 = vld [vmem:[#allocation6 + $0x18] sm:$0xff]
        %v458 = vld [vmem:[#allocation6 + $0x20] sm:$0xff]
        %v459 = vld [vmem:[#allocation6 + $0x28] sm:$0xff]
        %v460 = vld [vmem:[#allocation6 + $0x30] sm:$0xff]
        %v461 = vld [vmem:[#allocation6 + $0x38] sm:$0xff]
        %v462 = vld [vmem:[#allocation6 + $0x40] sm:$0xff]
        %v463 = vld [vmem:[#allocation6 + $0x48] sm:$0xff]
        %v464 = vld [vmem:[#allocation6 + $0x50] sm:$0xff]
        %v465 = vld [vmem:[#allocation6 + $0x58] sm:$0xff]
        %v466 = vld [vmem:[#allocation6 + $0x60] sm:$0xff]
        %v467 = vld [vmem:[#allocation6 + $0x68] sm:$0xff]
        %v468 = vld [vmem:[#allocation6 + $0x70] sm:$0xff]
        %v469 = vld [vmem:[#allocation6 + $0x78] sm:$0xff]
        %v470 = vld [vmem:[%s5] sm:$0x1]
        %v471 = vlaneseq
        %v472 = vshrl.u32 %v471, 7
        %v473 = vsub.s32 0, %v472
        %v474 = vrot.slane %v398, %v473
        %476 = vbcast.lane.b32.xlu0 %v474, 256
        %v477 = vpop.permute.xlu0 %476
        %v478 = vlaneseq
        %v479 = vshrl.u32 %v478, 7
        %v480 = vsub.s32 1, %v479
        %v481 = vrot.slane %v398, %v480
        %483 = vbcast.lane.b32.xlu0 %v481, 256
        %v484 = vpop.permute.xlu0 %483
        %v485 = vlaneseq
        %v486 = vshrl.u32 %v485, 7
        %v487 = vsub.s32 2, %v486
        %v488 = vrot.slane %v398, %v487
        %490 = vbcast.lane.b32.xlu0 %v488, 256
        %v491 = vpop.permute.xlu0 %490
        %v492 = vlaneseq
        %v493 = vshrl.u32 %v492, 7
        %v494 = vsub.s32 3, %v493
        %v495 = vrot.slane %v398, %v494
        %497 = vbcast.lane.b32.xlu0 %v495, 256
        %v498 = vpop.permute.xlu0 %497
        %v499 = vlaneseq
        %v500 = vshrl.u32 %v499, 7
        %v501 = vsub.s32 4, %v500
        %v502 = vrot.slane %v398, %v501
        %504 = vbcast.lane.b32.xlu0 %v502, 256
        %v505 = vpop.permute.xlu0 %504
        %v506 = vlaneseq
        %v507 = vshrl.u32 %v506, 7
        %v508 = vsub.s32 5, %v507
        %v509 = vrot.slane %v398, %v508
        %511 = vbcast.lane.b32.xlu0 %v509, 256
        %v512 = vpop.permute.xlu0 %511
        %v513 = vlaneseq
        %v514 = vshrl.u32 %v513, 7
        %v515 = vsub.s32 6, %v514
        %v516 = vrot.slane %v398, %v515
        %518 = vbcast.lane.b32.xlu0 %v516, 256
        %v519 = vpop.permute.xlu0 %518
        %v520 = vlaneseq
        %v521 = vshrl.u32 %v520, 7
        %v522 = vsub.s32 7, %v521
        %v523 = vrot.slane %v398, %v522
        %525 = vbcast.lane.b32.xlu0 %v523, 256
        %v526 = vpop.permute.xlu0 %525
        %v527 = vlaneseq
        %v528 = vshrl.u32 %v527, 7
        %v529 = vsub.s32 0, %v528
        %v530 = vrot.slane %v400, %v529
        %532 = vbcast.lane.b32.xlu0 %v530, 256
        %v533 = vpop.permute.xlu0 %532
        %v534 = vlaneseq
        %v535 = vshrl.u32 %v534, 7
        %v536 = vsub.s32 1, %v535
        %v537 = vrot.slane %v400, %v536
        %539 = vbcast.lane.b32.xlu0 %v537, 256
        %v540 = vpop.permute.xlu0 %539
        %v541 = vlaneseq
        %v542 = vshrl.u32 %v541, 7
        %v543 = vsub.s32 2, %v542
        %v544 = vrot.slane %v400, %v543
        %546 = vbcast.lane.b32.xlu0 %v544, 256
        %v547 = vpop.permute.xlu0 %546
        %v548 = vlaneseq
        %v549 = vshrl.u32 %v548, 7
        %v550 = vsub.s32 3, %v549
        %v551 = vrot.slane %v400, %v550
        %553 = vbcast.lane.b32.xlu0 %v551, 256
        %v554 = vpop.permute.xlu0 %553
        %v555 = vlaneseq
        %v556 = vshrl.u32 %v555, 7
        %v557 = vsub.s32 4, %v556
        %v558 = vrot.slane %v400, %v557
        %560 = vbcast.lane.b32.xlu0 %v558, 256
        %v561 = vpop.permute.xlu0 %560
        %v562 = vlaneseq
        %v563 = vshrl.u32 %v562, 7
        %v564 = vsub.s32 5, %v563
        %v565 = vrot.slane %v400, %v564
        %567 = vbcast.lane.b32.xlu0 %v565, 256
        %v568 = vpop.permute.xlu0 %567
        %v569 = vlaneseq
        %v570 = vshrl.u32 %v569, 7
        %v571 = vsub.s32 6, %v570
        %v572 = vrot.slane %v400, %v571
        %574 = vbcast.lane.b32.xlu0 %v572, 256
        %v575 = vpop.permute.xlu0 %574
        %v576 = vlaneseq
        %v577 = vshrl.u32 %v576, 7
        %v578 = vsub.s32 7, %v577
        %v579 = vrot.slane %v400, %v578
        %581 = vbcast.lane.b32.xlu0 %v579, 256
        %v582 = vpop.permute.xlu0 %581
        %v583 = vmul.f32 %v405, %v477
        %v584 = vmul.f32 %v407, %v484
        %v585 = vmul.f32 %v409, %v491
        %v586 = vmul.f32 %v411, %v498
        %v587 = vmul.f32 %v413, %v505
        %v588 = vmul.f32 %v415, %v512
        %v589 = vmul.f32 %v417, %v519
        %v590 = vmul.f32 %v419, %v526
        %v591 = vmul.f32 %v421, %v533
        %v592 = vmul.f32 %v423, %v540
        %v593 = vmul.f32 %v425, %v547
        %v594 = vmul.f32 %v427, %v554
        %v595 = vmul.f32 %v429, %v561
        %v596 = vmul.f32 %v431, %v568
        %v597 = vmul.f32 %v433, %v575
        %v598 = vmul.f32 %v435, %v582
        %v599 = vrot.slane %v583, 4
        %v600 = vadd.f32 %v583, %v599
        %v601 = vrot.slane %v600, 2
        %v602 = vadd.f32 %v600, %v601
        %v603 = vrot.slane %v602, 1
        %v604 = vadd.f32 %v602, %v603
        %v605 = vrot.slane %v584, 4
        %v606 = vadd.f32 %v584, %v605
        %v607 = vrot.slane %v606, 2
        %v608 = vadd.f32 %v606, %v607
        %v609 = vrot.slane %v608, 1
        %v610 = vadd.f32 %v608, %v609
        %v611 = vrot.slane %v585, 4
        %v612 = vadd.f32 %v585, %v611
        %v613 = vrot.slane %v612, 2
        %v614 = vadd.f32 %v612, %v613
        %v615 = vrot.slane %v614, 1
        %v616 = vadd.f32 %v614, %v615
        %v617 = vrot.slane %v586, 4
        %v618 = vadd.f32 %v586, %v617
        %v619 = vrot.slane %v618, 2
        %v620 = vadd.f32 %v618, %v619
        %v621 = vrot.slane %v620, 1
        %v622 = vadd.f32 %v620, %v621
        %v623 = vrot.slane %v587, 4
        %v624 = vadd.f32 %v587, %v623
        %v625 = vrot.slane %v624, 2
        %v626 = vadd.f32 %v624, %v625
        %v627 = vrot.slane %v626, 1
        %v628 = vadd.f32 %v626, %v627
        %v629 = vrot.slane %v588, 4
        %v630 = vadd.f32 %v588, %v629
        %v631 = vrot.slane %v630, 2
        %v632 = vadd.f32 %v630, %v631
        %v633 = vrot.slane %v632, 1
        %v634 = vadd.f32 %v632, %v633
        %v635 = vrot.slane %v589, 4
        %v636 = vadd.f32 %v589, %v635
        %v637 = vrot.slane %v636, 2
        %v638 = vadd.f32 %v636, %v637
        %v639 = vrot.slane %v638, 1
        %v640 = vadd.f32 %v638, %v639
        %v641 = vrot.slane %v590, 4
        %v642 = vadd.f32 %v590, %v641
        %v643 = vrot.slane %v642, 2
        %v644 = vadd.f32 %v642, %v643
        %v645 = vrot.slane %v644, 1
        %v646 = vadd.f32 %v644, %v645
        %v647 = vrot.slane %v591, 4
        %v648 = vadd.f32 %v591, %v647
        %v649 = vrot.slane %v648, 2
        %v650 = vadd.f32 %v648, %v649
        %v651 = vrot.slane %v650, 1
        %v652 = vadd.f32 %v650, %v651
        %v653 = vrot.slane %v592, 4
        %v654 = vadd.f32 %v592, %v653
        %v655 = vrot.slane %v654, 2
        %v656 = vadd.f32 %v654, %v655
        %v657 = vrot.slane %v656, 1
        %v658 = vadd.f32 %v656, %v657
        %v659 = vrot.slane %v593, 4
        %v660 = vadd.f32 %v593, %v659
        %v661 = vrot.slane %v660, 2
        %v662 = vadd.f32 %v660, %v661
        %v663 = vrot.slane %v662, 1
        %v664 = vadd.f32 %v662, %v663
        %v665 = vrot.slane %v594, 4
        %v666 = vadd.f32 %v594, %v665
        %v667 = vrot.slane %v666, 2
        %v668 = vadd.f32 %v666, %v667
        %v669 = vrot.slane %v668, 1
        %v670 = vadd.f32 %v668, %v669
        %v671 = vrot.slane %v595, 4
        %v672 = vadd.f32 %v595, %v671
        %v673 = vrot.slane %v672, 2
        %v674 = vadd.f32 %v672, %v673
        %v675 = vrot.slane %v674, 1
        %v676 = vadd.f32 %v674, %v675
        %v677 = vrot.slane %v596, 4
        %v678 = vadd.f32 %v596, %v677
        %v679 = vrot.slane %v678, 2
        %v680 = vadd.f32 %v678, %v679
        %v681 = vrot.slane %v680, 1
        %v682 = vadd.f32 %v680, %v681
        %v683 = vrot.slane %v597, 4
        %v684 = vadd.f32 %v597, %v683
        %v685 = vrot.slane %v684, 2
        %v686 = vadd.f32 %v684, %v685
        %v687 = vrot.slane %v686, 1
        %v688 = vadd.f32 %v686, %v687
        %v689 = vrot.slane %v598, 4
        %v690 = vadd.f32 %v598, %v689
        %v691 = vrot.slane %v690, 2
        %v692 = vadd.f32 %v690, %v691
        %v693 = vrot.slane %v692, 1
        %v694 = vadd.f32 %v692, %v693
        %v696 = vlaneseq
        %v697 = vshrl.u32 %v696, 7
        %v698 = vsub.s32 0, %v697
        %v699 = vrot.slane %v453, %v698
        %vm717 = vcmask 1041409
        %v718 = vsel %vm717, %v610, %v604
        %vm719 = vcmask 1042434
        %v720 = vsel %vm719, %v616, %v718
        %vm721 = vcmask 1043459
        %v722 = vsel %vm721, %v622, %v720
        %vm723 = vcmask 1044484
        %v724 = vsel %vm723, %v628, %v722
        %vm725 = vcmask 1045509
        %v726 = vsel %vm725, %v634, %v724
        %vm727 = vcmask 1046534
        %v728 = vsel %vm727, %v640, %v726
        %vm729 = vcmask 1047559
        %v730 = vsel %vm729, %v646, %v728
        %v731 = vsel %vm717, %v658, %v652
        %v732 = vsel %vm719, %v664, %v731
        %v733 = vsel %vm721, %v670, %v732
        %v734 = vsel %vm723, %v676, %v733
        %v735 = vsel %vm725, %v682, %v734
        %v736 = vsel %vm727, %v688, %v735
        %v737 = vsel %vm729, %v694, %v736
        %740 = vmatprep.subr.mxu0 0.0
        %741 = vmatpush1.msra.mxu0 %v437
        %742 = vmatprep.subr.mxu0 0.0
        %743 = vmatpush1.msra.mxu0 %v438
        %744 = vmatprep.subr.mxu0 0.0
        %745 = vmatpush1.msra.mxu0 %v439
        %746 = vmatprep.subr.mxu0 0.0
        %747 = vmatpush1.msra.mxu0 %v440
        %748 = vmatprep.subr.mxu0 0.0
        %749 = vmatpush1.msra.mxu0 %v441
        %750 = vmatprep.subr.mxu0 0.0
        %751 = vmatpush1.msra.mxu0 %v442
        %752 = vmatprep.subr.mxu0 0.0
        %753 = vmatpush1.msra.mxu0 %v443
        %754 = vmatprep.subr.mxu0 0.0
        %755 = vmatpush1.msra.mxu0 %v444
        %756 = vmatprep.subr.mxu0 0.0
        %757 = vmatpush1.msra.mxu0 %v445
        %758 = vmatprep.subr.mxu0 0.0
        %759 = vmatpush1.msra.mxu0 %v446
        %760 = vmatprep.subr.mxu0 0.0
        %761 = vmatpush1.msra.mxu0 %v447
        %762 = vmatprep.subr.mxu0 0.0
        %763 = vmatpush1.msra.mxu0 %v448
        %764 = vmatprep.subr.mxu0 0.0
        %765 = vmatpush1.msra.mxu0 %v449
        %766 = vmatprep.subr.mxu0 0.0
        %767 = vmatpush1.msra.mxu0 %v450
        %768 = vmatprep.subr.mxu0 0.0
        %769 = vmatpush1.msra.mxu0 %v451
        %770 = vmatprep.subr.mxu0 0.0
        %771 = vmatpush1.msra.mxu0 %v452
        %772 = vmatprep.subr.mxu0 0.0
        %773 = vmatpush1.msra.mxu0 0.0
        %774 = vmatprep.subr.mxu0 0.0
        %775 = vmatpush1.msra.mxu0 0.0
        %776 = vmatprep.subr.mxu0 0.0
        %777 = vmatpush1.msra.mxu0 0.0
        %778 = vmatprep.subr.mxu0 0.0
        %779 = vmatpush1.msra.mxu0 0.0
        %780 = vmatprep.subr.mxu0 0.0
        %781 = vmatpush1.msra.mxu0 0.0
        %782 = vmatprep.subr.mxu0 0.0
        %783 = vmatpush1.msra.mxu0 0.0
        %784 = vmatprep.subr.mxu0 0.0
        %785 = vmatpush1.msra.mxu0 0.0
        %786 = vmatprep.subr.mxu0 0.0
        %787 = vmatpush1.msra.mxu0 0.0
        %788 = vmatprep.subr.mxu0 0.0
        %789 = vmatpush1.msra.mxu0 0.0
        %790 = vmatprep.subr.mxu0 0.0
        %791 = vmatpush1.msra.mxu0 0.0
        %792 = vmatprep.subr.mxu0 0.0
        %793 = vmatpush1.msra.mxu0 0.0
        %794 = vmatprep.subr.mxu0 0.0
        %795 = vmatpush1.msra.mxu0 0.0
        %796 = vmatprep.subr.mxu0 0.0
        %797 = vmatpush1.msra.mxu0 0.0
        %798 = vmatprep.subr.mxu0 0.0
        %799 = vmatpush1.msra.mxu0 0.0
        %800 = vmatprep.subr.mxu0 0.0
        %801 = vmatpush1.msra.mxu0 0.0
        %802 = vmatprep.subr.mxu0 0.0
        %803 = vmatpush1.msra.mxu0 0.0
        %804 = vmatprep.mubr.f32.mxu0 0.0
        %805 = vmatmul.mubr.f32.gmra.mrb[0].mxu0 %v730
        %v806 = vpop.f32.mrb[0].mxu0
        %v807 = vadd.f32 %v699, %v806
        %v808 = vpop.f32.mrb[0].mxu0
        %809 = vmatprep.mubr.f32.mxu0 0.0
        %810 = vmatmul.mubr.f32.gmra.mrb[0].mxu0 %v737
        %v811 = vpop.f32.mrb[0].mxu0
        %v812 = vadd.f32 %v699, %v811
        %v813 = vpop.f32.mrb[0].mxu0
        %814 = vdwg.mxu0
        %v816 = vlaneseq
        %v817 = vshrl.u32 %v816, 7
        %v818 = vsub.s32 0, %v817
        %v819 = vrot.slane %v470, %v818
        %821 = vmatprep.subr.mxu0 0.0
        %822 = vmatpush1.msra.mxu0 %v454
        %823 = vmatprep.subr.mxu0 0.0
        %824 = vmatpush1.msra.mxu0 %v455
        %825 = vmatprep.subr.mxu0 0.0
        %826 = vmatpush1.msra.mxu0 %v456
        %827 = vmatprep.subr.mxu0 0.0
        %828 = vmatpush1.msra.mxu0 %v457
        %829 = vmatprep.subr.mxu0 0.0
        %830 = vmatpush1.msra.mxu0 %v458
        %831 = vmatprep.subr.mxu0 0.0
        %832 = vmatpush1.msra.mxu0 %v459
        %833 = vmatprep.subr.mxu0 0.0
        %834 = vmatpush1.msra.mxu0 %v460
        %835 = vmatprep.subr.mxu0 0.0
        %836 = vmatpush1.msra.mxu0 %v461
        %837 = vmatprep.subr.mxu0 0.0
        %838 = vmatpush1.msra.mxu0 %v462
        %839 = vmatprep.subr.mxu0 0.0
        %840 = vmatpush1.msra.mxu0 %v463
        %841 = vmatprep.subr.mxu0 0.0
        %842 = vmatpush1.msra.mxu0 %v464
        %843 = vmatprep.subr.mxu0 0.0
        %844 = vmatpush1.msra.mxu0 %v465
        %845 = vmatprep.subr.mxu0 0.0
        %846 = vmatpush1.msra.mxu0 %v466
        %847 = vmatprep.subr.mxu0 0.0
        %848 = vmatpush1.msra.mxu0 %v467
        %849 = vmatprep.subr.mxu0 0.0
        %850 = vmatpush1.msra.mxu0 %v468
        %851 = vmatprep.subr.mxu0 0.0
        %852 = vmatpush1.msra.mxu0 %v469
        %853 = vmatprep.subr.mxu0 0.0
        %854 = vmatpush1.msra.mxu0 0.0
        %855 = vmatprep.subr.mxu0 0.0
        %856 = vmatpush1.msra.mxu0 0.0
        %857 = vmatprep.subr.mxu0 0.0
        %858 = vmatpush1.msra.mxu0 0.0
        %859 = vmatprep.subr.mxu0 0.0
        %860 = vmatpush1.msra.mxu0 0.0
        %861 = vmatprep.subr.mxu0 0.0
        %862 = vmatpush1.msra.mxu0 0.0
        %863 = vmatprep.subr.mxu0 0.0
        %864 = vmatpush1.msra.mxu0 0.0
        %865 = vmatprep.subr.mxu0 0.0
        %866 = vmatpush1.msra.mxu0 0.0
        %867 = vmatprep.subr.mxu0 0.0
        %868 = vmatpush1.msra.mxu0 0.0
        %869 = vmatprep.subr.mxu0 0.0
        %870 = vmatpush1.msra.mxu0 0.0
        %871 = vmatprep.subr.mxu0 0.0
        %872 = vmatpush1.msra.mxu0 0.0
        %873 = vmatprep.subr.mxu0 0.0
        %874 = vmatpush1.msra.mxu0 0.0
        %875 = vmatprep.subr.mxu0 0.0
        %876 = vmatpush1.msra.mxu0 0.0
        %877 = vmatprep.subr.mxu0 0.0
        %878 = vmatpush1.msra.mxu0 0.0
        %879 = vmatprep.subr.mxu0 0.0
        %880 = vmatpush1.msra.mxu0 0.0
        %881 = vmatprep.subr.mxu0 0.0
        %882 = vmatpush1.msra.mxu0 0.0
        %883 = vmatprep.subr.mxu0 0.0
        %884 = vmatpush1.msra.mxu0 0.0
        %885 = vmatprep.mubr.f32.mxu0 0.0
        %886 = vmatmul.mubr.f32.gmra.mrb[0].mxu0 %v807
        %v887 = vpop.f32.mrb[0].mxu0
        %v888 = vadd.f32 %v819, %v887
        %v889 = vpop.f32.mrb[0].mxu0
        %890 = vmatprep.mubr.f32.mxu0 0.0
        %891 = vmatmul.mubr.f32.gmra.mrb[0].mxu0 %v812
        %v892 = vpop.f32.mrb[0].mxu0
        %v893 = vadd.f32 %v819, %v892
        %v894 = vpop.f32.mrb[0].mxu0
        %895 = vdwg.mxu0
        %v896 = vlaneseq
        %v897 = vshrl.u32 %v896, 7
        %v898 = vsub.s32 0, %v897
        %v899 = vrot.slane %v402, %v898
        %901 = vbcast.lane.b32.xlu0 %v899, 256
        %v902 = vpop.permute.xlu0 %901
        %v903 = vlaneseq
        %v904 = vshrl.u32 %v903, 7
        %v905 = vsub.s32 1, %v904
        %v906 = vrot.slane %v402, %v905
        %908 = vbcast.lane.b32.xlu0 %v906, 256
        %v909 = vpop.permute.xlu0 %908
        %v910 = vlaneseq
        %v911 = vshrl.u32 %v910, 7
        %v912 = vsub.s32 2, %v911
        %v913 = vrot.slane %v402, %v912
        %915 = vbcast.lane.b32.xlu0 %v913, 256
        %v916 = vpop.permute.xlu0 %915
        %v917 = vlaneseq
        %v918 = vshrl.u32 %v917, 7
        %v919 = vsub.s32 3, %v918
        %v920 = vrot.slane %v402, %v919
        %922 = vbcast.lane.b32.xlu0 %v920, 256
        %v923 = vpop.permute.xlu0 %922
        %v924 = vlaneseq
        %v925 = vshrl.u32 %v924, 7
        %v926 = vsub.s32 4, %v925
        %v927 = vrot.slane %v402, %v926
        %929 = vbcast.lane.b32.xlu0 %v927, 256
        %v930 = vpop.permute.xlu0 %929
        %v931 = vlaneseq
        %v932 = vshrl.u32 %v931, 7
        %v933 = vsub.s32 5, %v932
        %v934 = vrot.slane %v402, %v933
        %936 = vbcast.lane.b32.xlu0 %v934, 256
        %v937 = vpop.permute.xlu0 %936
        %v938 = vlaneseq
        %v939 = vshrl.u32 %v938, 7
        %v940 = vsub.s32 6, %v939
        %v941 = vrot.slane %v402, %v940
        %943 = vbcast.lane.b32.xlu0 %v941, 256
        %v944 = vpop.permute.xlu0 %943
        %v945 = vlaneseq
        %v946 = vshrl.u32 %v945, 7
        %v947 = vsub.s32 7, %v946
        %v948 = vrot.slane %v402, %v947
        %950 = vbcast.lane.b32.xlu0 %v948, 256
        %v951 = vpop.permute.xlu0 %950
        %v952 = vlaneseq
        %v953 = vshrl.u32 %v952, 7
        %v954 = vsub.s32 0, %v953
        %v955 = vrot.slane %v404, %v954
        %957 = vbcast.lane.b32.xlu0 %v955, 256
        %v958 = vpop.permute.xlu0 %957
        %v959 = vlaneseq
        %v960 = vshrl.u32 %v959, 7
        %v961 = vsub.s32 1, %v960
        %v962 = vrot.slane %v404, %v961
        %964 = vbcast.lane.b32.xlu0 %v962, 256
        %v965 = vpop.permute.xlu0 %964
        %v966 = vlaneseq
        %v967 = vshrl.u32 %v966, 7
        %v968 = vsub.s32 2, %v967
        %v969 = vrot.slane %v404, %v968
        %971 = vbcast.lane.b32.xlu0 %v969, 256
        %v972 = vpop.permute.xlu0 %971
        %v973 = vlaneseq
        %v974 = vshrl.u32 %v973, 7
        %v975 = vsub.s32 3, %v974
        %v976 = vrot.slane %v404, %v975
        %978 = vbcast.lane.b32.xlu0 %v976, 256
        %v979 = vpop.permute.xlu0 %978
        %v980 = vlaneseq
        %v981 = vshrl.u32 %v980, 7
        %v982 = vsub.s32 4, %v981
        %v983 = vrot.slane %v404, %v982
        %985 = vbcast.lane.b32.xlu0 %v983, 256
        %v986 = vpop.permute.xlu0 %985
        %v987 = vlaneseq
        %v988 = vshrl.u32 %v987, 7
        %v989 = vsub.s32 5, %v988
        %v990 = vrot.slane %v404, %v989
        %992 = vbcast.lane.b32.xlu0 %v990, 256
        %v993 = vpop.permute.xlu0 %992
        %v994 = vlaneseq
        %v995 = vshrl.u32 %v994, 7
        %v996 = vsub.s32 6, %v995
        %v997 = vrot.slane %v404, %v996
        %999 = vbcast.lane.b32.xlu0 %v997, 256
        %v1000 = vpop.permute.xlu0 %999
        %v1001 = vlaneseq
        %v1002 = vshrl.u32 %v1001, 7
        %v1003 = vsub.s32 7, %v1002
        %v1004 = vrot.slane %v404, %v1003
        %1006 = vbcast.lane.b32.xlu0 %v1004, 256
        %v1007 = vpop.permute.xlu0 %1006
        %v1008 = vmul.f32 %v406, %v902
        %v1009 = vmul.f32 %v408, %v909
        %v1010 = vmul.f32 %v410, %v916
        %v1011 = vmul.f32 %v412, %v923
        %v1012 = vmul.f32 %v414, %v930
        %v1013 = vmul.f32 %v416, %v937
        %v1014 = vmul.f32 %v418, %v944
        %v1015 = vmul.f32 %v420, %v951
        %v1016 = vmul.f32 %v422, %v958
        %v1017 = vmul.f32 %v424, %v965
        %v1018 = vmul.f32 %v426, %v972
        %v1019 = vmul.f32 %v428, %v979
        %v1020 = vmul.f32 %v430, %v986
        %v1021 = vmul.f32 %v432, %v993
        %v1022 = vmul.f32 %v434, %v1000
        %v1023 = vmul.f32 %v436, %v1007
        %v1024 = vrot.slane %v1008, 4
        %v1025 = vadd.f32 %v1008, %v1024
        %v1026 = vrot.slane %v1025, 2
        %v1027 = vadd.f32 %v1025, %v1026
        %v1028 = vrot.slane %v1027, 1
        %v1029 = vadd.f32 %v1027, %v1028
        %v1030 = vrot.slane %v1009, 4
        %v1031 = vadd.f32 %v1009, %v1030
        %v1032 = vrot.slane %v1031, 2
        %v1033 = vadd.f32 %v1031, %v1032
        %v1034 = vrot.slane %v1033, 1
        %v1035 = vadd.f32 %v1033, %v1034
        %v1036 = vrot.slane %v1010, 4
        %v1037 = vadd.f32 %v1010, %v1036
        %v1038 = vrot.slane %v1037, 2
        %v1039 = vadd.f32 %v1037, %v1038
        %v1040 = vrot.slane %v1039, 1
        %v1041 = vadd.f32 %v1039, %v1040
        %v1042 = vrot.slane %v1011, 4
        %v1043 = vadd.f32 %v1011, %v1042
        %v1044 = vrot.slane %v1043, 2
        %v1045 = vadd.f32 %v1043, %v1044
        %v1046 = vrot.slane %v1045, 1
        %v1047 = vadd.f32 %v1045, %v1046
        %v1048 = vrot.slane %v1012, 4
        %v1049 = vadd.f32 %v1012, %v1048
        %v1050 = vrot.slane %v1049, 2
        %v1051 = vadd.f32 %v1049, %v1050
        %v1052 = vrot.slane %v1051, 1
        %v1053 = vadd.f32 %v1051, %v1052
        %v1054 = vrot.slane %v1013, 4
        %v1055 = vadd.f32 %v1013, %v1054
        %v1056 = vrot.slane %v1055, 2
        %v1057 = vadd.f32 %v1055, %v1056
        %v1058 = vrot.slane %v1057, 1
        %v1059 = vadd.f32 %v1057, %v1058
        %v1060 = vrot.slane %v1014, 4
        %v1061 = vadd.f32 %v1014, %v1060
        %v1062 = vrot.slane %v1061, 2
        %v1063 = vadd.f32 %v1061, %v1062
        %v1064 = vrot.slane %v1063, 1
        %v1065 = vadd.f32 %v1063, %v1064
        %v1066 = vrot.slane %v1015, 4
        %v1067 = vadd.f32 %v1015, %v1066
        %v1068 = vrot.slane %v1067, 2
        %v1069 = vadd.f32 %v1067, %v1068
        %v1070 = vrot.slane %v1069, 1
        %v1071 = vadd.f32 %v1069, %v1070
        %v1072 = vrot.slane %v1016, 4
        %v1073 = vadd.f32 %v1016, %v1072
        %v1074 = vrot.slane %v1073, 2
        %v1075 = vadd.f32 %v1073, %v1074
        %v1076 = vrot.slane %v1075, 1
        %v1077 = vadd.f32 %v1075, %v1076
        %v1078 = vrot.slane %v1017, 4
        %v1079 = vadd.f32 %v1017, %v1078
        %v1080 = vrot.slane %v1079, 2
        %v1081 = vadd.f32 %v1079, %v1080
        %v1082 = vrot.slane %v1081, 1
        %v1083 = vadd.f32 %v1081, %v1082
        %v1084 = vrot.slane %v1018, 4
        %v1085 = vadd.f32 %v1018, %v1084
        %v1086 = vrot.slane %v1085, 2
        %v1087 = vadd.f32 %v1085, %v1086
        %v1088 = vrot.slane %v1087, 1
        %v1089 = vadd.f32 %v1087, %v1088
        %v1090 = vrot.slane %v1019, 4
        %v1091 = vadd.f32 %v1019, %v1090
        %v1092 = vrot.slane %v1091, 2
        %v1093 = vadd.f32 %v1091, %v1092
        %v1094 = vrot.slane %v1093, 1
        %v1095 = vadd.f32 %v1093, %v1094
        %v1096 = vrot.slane %v1020, 4
        %v1097 = vadd.f32 %v1020, %v1096
        %v1098 = vrot.slane %v1097, 2
        %v1099 = vadd.f32 %v1097, %v1098
        %v1100 = vrot.slane %v1099, 1
        %v1101 = vadd.f32 %v1099, %v1100
        %v1102 = vrot.slane %v1021, 4
        %v1103 = vadd.f32 %v1021, %v1102
        %v1104 = vrot.slane %v1103, 2
        %v1105 = vadd.f32 %v1103, %v1104
        %v1106 = vrot.slane %v1105, 1
        %v1107 = vadd.f32 %v1105, %v1106
        %v1108 = vrot.slane %v1022, 4
        %v1109 = vadd.f32 %v1022, %v1108
        %v1110 = vrot.slane %v1109, 2
        %v1111 = vadd.f32 %v1109, %v1110
        %v1112 = vrot.slane %v1111, 1
        %v1113 = vadd.f32 %v1111, %v1112
        %v1114 = vrot.slane %v1023, 4
        %v1115 = vadd.f32 %v1023, %v1114
        %v1116 = vrot.slane %v1115, 2
        %v1117 = vadd.f32 %v1115, %v1116
        %v1118 = vrot.slane %v1117, 1
        %v1119 = vadd.f32 %v1117, %v1118
        %v1136 = vsel %vm717, %v1035, %v1029
        %v1137 = vsel %vm719, %v1041, %v1136
        %v1138 = vsel %vm721, %v1047, %v1137
        %v1139 = vsel %vm723, %v1053, %v1138
        %v1140 = vsel %vm725, %v1059, %v1139
        %v1141 = vsel %vm727, %v1065, %v1140
        %v1142 = vsel %vm729, %v1071, %v1141
        %v1143 = vsel %vm717, %v1083, %v1077
        %v1144 = vsel %vm719, %v1089, %v1143
        %v1145 = vsel %vm721, %v1095, %v1144
        %v1146 = vsel %vm723, %v1101, %v1145
        %v1147 = vsel %vm725, %v1107, %v1146
        %v1148 = vsel %vm727, %v1113, %v1147
        %v1149 = vsel %vm729, %v1119, %v1148
        %1152 = vmatprep.subr.mxu0 0.0
        %1153 = vmatpush1.msra.mxu0 %v437
        %1154 = vmatprep.subr.mxu0 0.0
        %1155 = vmatpush1.msra.mxu0 %v438
        %1156 = vmatprep.subr.mxu0 0.0
        %1157 = vmatpush1.msra.mxu0 %v439
        %1158 = vmatprep.subr.mxu0 0.0
        %1159 = vmatpush1.msra.mxu0 %v440
        %1160 = vmatprep.subr.mxu0 0.0
        %1161 = vmatpush1.msra.mxu0 %v441
        %1162 = vmatprep.subr.mxu0 0.0
        %1163 = vmatpush1.msra.mxu0 %v442
        %1164 = vmatprep.subr.mxu0 0.0
        %1165 = vmatpush1.msra.mxu0 %v443
        %1166 = vmatprep.subr.mxu0 0.0
        %1167 = vmatpush1.msra.mxu0 %v444
        %1168 = vmatprep.subr.mxu0 0.0
        %1169 = vmatpush1.msra.mxu0 %v445
        %1170 = vmatprep.subr.mxu0 0.0
        %1171 = vmatpush1.msra.mxu0 %v446
        %1172 = vmatprep.subr.mxu0 0.0
        %1173 = vmatpush1.msra.mxu0 %v447
        %1174 = vmatprep.subr.mxu0 0.0
        %1175 = vmatpush1.msra.mxu0 %v448
        %1176 = vmatprep.subr.mxu0 0.0
        %1177 = vmatpush1.msra.mxu0 %v449
        %1178 = vmatprep.subr.mxu0 0.0
        %1179 = vmatpush1.msra.mxu0 %v450
        %1180 = vmatprep.subr.mxu0 0.0
        %1181 = vmatpush1.msra.mxu0 %v451
        %1182 = vmatprep.subr.mxu0 0.0
        %1183 = vmatpush1.msra.mxu0 %v452
        %1184 = vmatprep.subr.mxu0 0.0
        %1185 = vmatpush1.msra.mxu0 0.0
        %1186 = vmatprep.subr.mxu0 0.0
        %1187 = vmatpush1.msra.mxu0 0.0
        %1188 = vmatprep.subr.mxu0 0.0
        %1189 = vmatpush1.msra.mxu0 0.0
        %1190 = vmatprep.subr.mxu0 0.0
        %1191 = vmatpush1.msra.mxu0 0.0
        %1192 = vmatprep.subr.mxu0 0.0
        %1193 = vmatpush1.msra.mxu0 0.0
        %1194 = vmatprep.subr.mxu0 0.0
        %1195 = vmatpush1.msra.mxu0 0.0
        %1196 = vmatprep.subr.mxu0 0.0
        %1197 = vmatpush1.msra.mxu0 0.0
        %1198 = vmatprep.subr.mxu0 0.0
        %1199 = vmatpush1.msra.mxu0 0.0
        %1200 = vmatprep.subr.mxu0 0.0
        %1201 = vmatpush1.msra.mxu0 0.0
        %1202 = vmatprep.subr.mxu0 0.0
        %1203 = vmatpush1.msra.mxu0 0.0
        %1204 = vmatprep.subr.mxu0 0.0
        %1205 = vmatpush1.msra.mxu0 0.0
        %1206 = vmatprep.subr.mxu0 0.0
        %1207 = vmatpush1.msra.mxu0 0.0
        %1208 = vmatprep.subr.mxu0 0.0
        %1209 = vmatpush1.msra.mxu0 0.0
        %1210 = vmatprep.subr.mxu0 0.0
        %1211 = vmatpush1.msra.mxu0 0.0
        %1212 = vmatprep.subr.mxu0 0.0
        %1213 = vmatpush1.msra.mxu0 0.0
        %1214 = vmatprep.subr.mxu0 0.0
        %1215 = vmatpush1.msra.mxu0 0.0
        %1216 = vmatprep.mubr.f32.mxu0 0.0
        %1217 = vmatmul.mubr.f32.gmra.mrb[0].mxu0 %v1142
        %v1218 = vpop.f32.mrb[0].mxu0
        %v1219 = vadd.f32 %v699, %v1218
        %v1220 = vpop.f32.mrb[0].mxu0
        %1221 = vmatprep.mubr.f32.mxu0 0.0
        %1222 = vmatmul.mubr.f32.gmra.mrb[0].mxu0 %v1149
        %v1223 = vpop.f32.mrb[0].mxu0
        %v1224 = vadd.f32 %v699, %v1223
        %v1225 = vpop.f32.mrb[0].mxu0
        %1226 = vdwg.mxu0
        %1227 = vmatprep.subr.mxu0 0.0
        %1228 = vmatpush1.msra.mxu0 %v454
        %1229 = vmatprep.subr.mxu0 0.0
        %1230 = vmatpush1.msra.mxu0 %v455
        %1231 = vmatprep.subr.mxu0 0.0
        %1232 = vmatpush1.msra.mxu0 %v456
        %1233 = vmatprep.subr.mxu0 0.0
        %1234 = vmatpush1.msra.mxu0 %v457
        %1235 = vmatprep.subr.mxu0 0.0
        %1236 = vmatpush1.msra.mxu0 %v458
        %1237 = vmatprep.subr.mxu0 0.0
        %1238 = vmatpush1.msra.mxu0 %v459
        %1239 = vmatprep.subr.mxu0 0.0
        %1240 = vmatpush1.msra.mxu0 %v460
        %1241 = vmatprep.subr.mxu0 0.0
        %1242 = vmatpush1.msra.mxu0 %v461
        %1243 = vmatprep.subr.mxu0 0.0
        %1244 = vmatpush1.msra.mxu0 %v462
        %1245 = vmatprep.subr.mxu0 0.0
        %1246 = vmatpush1.msra.mxu0 %v463
        %1247 = vmatprep.subr.mxu0 0.0
        %1248 = vmatpush1.msra.mxu0 %v464
        %1249 = vmatprep.subr.mxu0 0.0
        %1250 = vmatpush1.msra.mxu0 %v465
        %1251 = vmatprep.subr.mxu0 0.0
        %1252 = vmatpush1.msra.mxu0 %v466
        %1253 = vmatprep.subr.mxu0 0.0
        %1254 = vmatpush1.msra.mxu0 %v467
        %1255 = vmatprep.subr.mxu0 0.0
        %1256 = vmatpush1.msra.mxu0 %v468
        %1257 = vmatprep.subr.mxu0 0.0
        %1258 = vmatpush1.msra.mxu0 %v469
        %1259 = vmatprep.subr.mxu0 0.0
        %1260 = vmatpush1.msra.mxu0 0.0
        %1261 = vmatprep.subr.mxu0 0.0
        %1262 = vmatpush1.msra.mxu0 0.0
        %1263 = vmatprep.subr.mxu0 0.0
        %1264 = vmatpush1.msra.mxu0 0.0
        %1265 = vmatprep.subr.mxu0 0.0
        %1266 = vmatpush1.msra.mxu0 0.0
        %1267 = vmatprep.subr.mxu0 0.0
        %1268 = vmatpush1.msra.mxu0 0.0
        %1269 = vmatprep.subr.mxu0 0.0
        %1270 = vmatpush1.msra.mxu0 0.0
        %1271 = vmatprep.subr.mxu0 0.0
        %1272 = vmatpush1.msra.mxu0 0.0
        %1273 = vmatprep.subr.mxu0 0.0
        %1274 = vmatpush1.msra.mxu0 0.0
        %1275 = vmatprep.subr.mxu0 0.0
        %1276 = vmatpush1.msra.mxu0 0.0
        %1277 = vmatprep.subr.mxu0 0.0
        %1278 = vmatpush1.msra.mxu0 0.0
        %1279 = vmatprep.subr.mxu0 0.0
        %1280 = vmatpush1.msra.mxu0 0.0
        %1281 = vmatprep.subr.mxu0 0.0
        %1282 = vmatpush1.msra.mxu0 0.0
        %1283 = vmatprep.subr.mxu0 0.0
        %1284 = vmatpush1.msra.mxu0 0.0
        %1285 = vmatprep.subr.mxu0 0.0
        %1286 = vmatpush1.msra.mxu0 0.0
        %1287 = vmatprep.subr.mxu0 0.0
        %1288 = vmatpush1.msra.mxu0 0.0
        %1289 = vmatprep.subr.mxu0 0.0
        %1290 = vmatpush1.msra.mxu0 0.0
        %1291 = vmatprep.mubr.f32.mxu0 0.0
        %1292 = vmatmul.mubr.f32.gmra.mrb[0].mxu0 %v1219
        %v1293 = vpop.f32.mrb[0].mxu0
        %v1294 = vadd.f32 %v819, %v1293
        %v1295 = vpop.f32.mrb[0].mxu0
        %1296 = vmatprep.mubr.f32.mxu0 0.0
        %1297 = vmatmul.mubr.f32.gmra.mrb[0].mxu0 %v1224
        %v1298 = vpop.f32.mrb[0].mxu0
        %v1299 = vadd.f32 %v819, %v1298
        %v1300 = vpop.f32.mrb[0].mxu0
        %1301 = vdwg.mxu0
        %1302 = vst [vmem:[%s352] sm:$0xff] %v888
        %1303 = vst [vmem:[%s352 + $0x8] sm:$0xff] %v1294
        %1304 = vst [vmem:[%s352 + $0x10] sm:$0xff] %v893
        %1305 = vst [vmem:[%s352 + $0x18] sm:$0xff] %v1299
        %s1306 = sand.u32 %s168, 1
        %s1307 = scalar_lea.sflag [#allocation4], %s1306
        %s1308 = sand.u32 %s168, 1
        %s1309 = smul.addr %s1308, 32
        %s1310 = scalar_lea.vmem [#allocation8], %s1309
        // Predicated region
        $region91: #{tpu_custom_call.1} parent=77 // pred_check
          %p1311 = pneg %p178
        $region92: #{tpu_custom_call.1} parent=77 // pred_check_branch
          %1313 = sbr.rel (%p1311) target = $region94
        $region93: #{tpu_custom_call.1} parent=77 // pred_region
          %s1314 = smul.u32 2, %s24
          %s1316 = ssub.s32 512, 512
          %1317 = vsyncadd %s1307, %s1316
          %s1318 = smul.addr %s1314, 2
          %s1319 = smul.addr %s1318, 128
          %s1320 = scalar_lea.hbm %s6, %s1319
          %s1321 = sshll.u32 %s1310, 4
          %s1322 = int_to_ptr.vmem [resolvable:$true] %s1321
          %1327 = dma.vmem_to_hbm [thread:$0]  %s1322, 512, %s1320, %s1307, 256, 256, 16
        $region94: #{tpu_custom_call.1} parent=77 // pred_fallthru
          _
      $region78: #{tpu_custom_call.1} parent=5 // pred_fallthru
        _
      %p1328 = scmp.le.s32.totalorder 2, %s19
      // Predicated region
      $region95: #{tpu_custom_call.1} parent=5 // pred_check
        %p1329 = pneg %p1328
      $region96: #{tpu_custom_call.1} parent=5 // pred_check_branch
        %1331 = sbr.rel (%p1329) target = $region98
      $region97: #{tpu_custom_call.1} parent=5 // pred_region
        %s1332 = ssub.s32 %s19, 2
        // Predicated region
        $region99: #{tpu_custom_call.1} parent=97 // pred_check
          %p1333 = pneg %p184
        $region100: #{tpu_custom_call.1} parent=97 // pred_check_branch
          %1335 = sbr.rel (%p1333) target = $region102
        $region101: #{tpu_custom_call.1} parent=97 // pred_region
          %s1336 = sand.u32 %s169, 1
          %s1337 = scalar_lea.sflag [#allocation4], %s1336
          %s1338 = sand.u32 %s169, 1
          %s1339 = smul.addr %s1338, 32
          %s1340 = scalar_lea.vmem [#allocation8], %s1339
          %1341 = dma.done %s1337, 512
        $region102: #{tpu_custom_call.1} parent=97 // pred_fallthru
          _
      $region98: #{tpu_custom_call.1} parent=5 // pred_fallthru
        _
    $region6: #{tpu_custom_call.1} parent=1 // loop_footer
      %s23 = sadd.s32 1, %s19
    $region7: #{tpu_custom_call.1} parent=1 // loop_footer_branch
      %18 = sbr.rel target = $region3
    $region8: #{tpu_custom_call.1} parent=1 // loop_exit
      _
    %1342 = vsyncpa [#allocation3], 1
    %s1343 = scalar_lea.sflag [#allocation3], 1
    %1344 = vsyncpa %s1343, 1
    %1345 = vsyncpa [#allocation7], 1
    %1346 = vsyncpa [#allocation4], 1
    %s1347 = scalar_lea.sflag [#allocation4], 1
    %1348 = vsyncpa %s1347, 1

</llo_original>
